<compile_context>
chip_gen: v7x
topology: tpu7x:2x2x1
jax: 0.10.0
libtpu: 0.0.40
codegen_flags: <defaults>
</compile_context>

<pallas_src>
import jax
import jax.numpy as jnp
from jax.experimental import pallas as pl
from jax.experimental.pallas import tpu as pltpu

# ---------------- model dimensions (small, synthetic) ----------------
WIN = 128      # frame / hop size (preprocessor subsampling factor)
NMELS = 128    # "mel" feature dim
HID = 128      # encoder hidden dim
VOCAB = 128    # BPE vocab size (CTC classes)
SUB = 128      # rows per in-kernel sub-tile (bounds vreg working set)


def _asr_kernel(frames_ref, wfb_ref, w1_ref, b1_ref, w2_ref, b2_ref,
                wd_ref, bd_ref, out_ref):
    """Fused preprocessor + encoder + CTC decoder + log_softmax.

    frames_ref: (TILE_T, WIN) bf16     out_ref: (TILE_T, VOCAB) f32
    weights:    bf16 [in, out]         biases:  f32 (1, out)
    """
    n_sub = frames_ref.shape[0] // SUB

    @pl.loop(0, n_sub)
    def _(s):
        r0 = pl.multiple_of(s * SUB, SUB)
        x = frames_ref[pl.ds(r0, SUB), :]                         # (SUB, WIN) bf16

        # --- preprocessor: filterbank projection + power + log compression ---
        p = jnp.dot(x, wfb_ref[...],
                    preferred_element_type=jnp.float32)           # (SUB, NMELS) f32
        feats = jnp.log(p * p + 1e-5)                             # f32 elementwise

        # --- encoder: 2-layer MLP with ReLU ---
        h = jnp.dot(feats.astype(jnp.bfloat16), w1_ref[...],
                    preferred_element_type=jnp.float32)
        h = jnp.maximum(h + b1_ref[...], 0.0)
        h = jnp.dot(h.astype(jnp.bfloat16), w2_ref[...],
                    preferred_element_type=jnp.float32)
        h = jnp.maximum(h + b2_ref[...], 0.0)                     # (SUB, HID)

        # --- decoder (1x1 conv == per-frame linear) + log_softmax over vocab ---
        logits = jnp.dot(h.astype(jnp.bfloat16), wd_ref[...],
                         preferred_element_type=jnp.float32)
        logits = logits + bd_ref[...]                             # (SUB, VOCAB)
        m = jnp.max(logits, axis=-1, keepdims=True)
        lse = jnp.log(jnp.sum(jnp.exp(logits - m), axis=-1, keepdims=True)) + m
        out_ref[pl.ds(r0, SUB), :] = logits - lse                 # f32 log-probs


def _pick_tile(rows):
    # Largest tile in {512, 256, 128} that still yields >= 2 grid steps so the
    # 'parallel' grid axis shards across both v7x TensorCores.
    for t in (512, 256, 128):
        if rows >= 2 * t:
            return t
    return 128


@jax.jit
def asr_nemo_forward(audio, s_audio_length, params):
    """audio: [B, L] float32; s_audio_length: [B] int32."""
    B, L = audio.shape
    T = L // WIN
    rows = B * T
    # framing (glue): [B, L] -> [B*T, WIN]; bf16 halves the streamed input bytes
    frames = audio[:, : T * WIN].reshape(rows, WIN).astype(jnp.bfloat16)

    tile_t = _pick_tile(rows)
    grid = (pl.cdiv(rows, tile_t),)        # ragged last block handled by Pallas
    resident = lambda i: (0, 0)            # weights stay VMEM-resident across grid

    wbytes = 2 * (WIN * NMELS + NMELS * HID + HID * HID + HID * VOCAB)
    flops = 2 * rows * (WIN * NMELS + NMELS * HID + HID * HID + HID * VOCAB)
    transcendentals = rows * (NMELS + VOCAB + 1)          # log + exp + log
    bytes_accessed = (rows * WIN * 2 +                     # bf16 frames in
                      rows * VOCAB * 4 +                   # f32 log-probs out
                      wbytes +                             # bf16 weights
                      4 * (2 * HID + VOCAB))               # f32 biases

    out_flat = pl.pallas_call(
        _asr_kernel,
        out_shape=jax.ShapeDtypeStruct((rows, VOCAB), jnp.float32),
        grid_spec=pltpu.PrefetchScalarGridSpec(
            num_scalar_prefetch=0,
            grid=grid,
            in_specs=[
                pl.BlockSpec((tile_t, WIN), lambda i: (i, 0)),
                pl.BlockSpec((WIN, NMELS), resident),
                pl.BlockSpec((NMELS, HID), resident),
                pl.BlockSpec((1, HID), resident),
                pl.BlockSpec((HID, HID), resident),
                pl.BlockSpec((1, HID), resident),
                pl.BlockSpec((HID, VOCAB), resident),
                pl.BlockSpec((1, VOCAB), resident),
            ],
            out_specs=pl.BlockSpec((tile_t, VOCAB), lambda i: (i, 0)),
        ),
        compiler_params=pltpu.CompilerParams(
            dimension_semantics=("parallel",)),
        cost_estimate=pl.CostEstimate(
            flops=flops,
            transcendentals=transcendentals,
            bytes_accessed=bytes_accessed),
    )(frames,
      params["w_fb"], params["w1"], params["b1"],
      params["w2"], params["b2"], params["w_dec"], params["b_dec"])

    tokens_logits = out_flat.reshape(B, T, VOCAB)

    # encoded lengths after preprocessor subsampling (scalar glue, plain JAX).
    # NOTE: frames past each utterance's valid length still produce log-probs;
    # downstream CTC must mask by s_audio_length (matches NeMo's contract).
    # TODO(synk): NeMo's exact conv-subsampling length formula not reproduced.
    out_lengths = (s_audio_length // WIN).astype(jnp.int32)
    return {"tokens_logits": tokens_logits, "s_audio_length": out_lengths}


def init_params(key):
    ks = jax.random.split(key, 6)
    scale = lambda fan_in: 1.0 / jnp.sqrt(jnp.float32(fan_in))
    bf16 = jnp.bfloat16
    return {
        # matmul weights stored bf16 (MXU inputs); biases stay f32.
        "w_fb": (jax.random.normal(ks[0], (WIN, NMELS), jnp.float32)
                 * scale(WIN)).astype(bf16),
        "w1": (jax.random.normal(ks[1], (NMELS, HID), jnp.float32)
               * scale(NMELS)).astype(bf16),
        "b1": jax.random.normal(ks[2], (1, HID), jnp.float32) * 0.01,
        "w2": (jax.random.normal(ks[3], (HID, HID), jnp.float32)
               * scale(HID)).astype(bf16),
        "b2": jnp.zeros((1, HID), jnp.float32),
        "w_dec": (jax.random.normal(ks[4], (HID, VOCAB), jnp.float32)
                  * scale(HID)).astype(bf16),
        "b_dec": jax.random.normal(ks[5], (1, VOCAB), jnp.float32) * 0.01,
    }


if __name__ == "__main__":
    key = jax.random.PRNGKey(0)
    k_audio, k_params = jax.random.split(key)

    B, L = 2, 65536                     # 2 utterances -> T=512 frames each
    audio = jax.random.normal(k_audio, (B, L), jnp.float32)
    s_audio_length = jnp.array([L, L - 3 * WIN], dtype=jnp.int32)
    params = init_params(k_params)

    out = asr_nemo_forward(audio, s_audio_length, params)
    jax.block_until_ready(out)

    tl = out["tokens_logits"]
    assert tl.shape == (B, L // WIN, VOCAB), tl.shape
    # log_softmax sanity: rows sum to ~1 in prob space
    assert jnp.allclose(jnp.sum(jnp.exp(tl), axis=-1), 1.0, atol=1e-3)
    assert bool(jnp.all(jnp.isfinite(tl)))
    assert out["s_audio_length"].shape == (B,)
    print("KERNEL_OK")
</pallas_src>

<mosaic_0001>
module attributes {stable_mosaic.version = 11 : i64} {
  func.func @_asr_kernel(%arg0: i32, %arg1: memref<512x128xbf16, #tpu.memory_space<vmem>>, %arg2: memref<128x128xbf16, #tpu.memory_space<vmem>>, %arg3: memref<128x128xbf16, #tpu.memory_space<vmem>>, %arg4: memref<1x128xf32, #tpu.memory_space<vmem>>, %arg5: memref<128x128xbf16, #tpu.memory_space<vmem>>, %arg6: memref<1x128xf32, #tpu.memory_space<vmem>>, %arg7: memref<128x128xbf16, #tpu.memory_space<vmem>>, %arg8: memref<1x128xf32, #tpu.memory_space<vmem>>, %arg9: memref<512x128xf32, #tpu.memory_space<vmem>>) attributes {dimension_semantics = [#tpu.dimension_semantics<parallel>], iteration_bounds = array<i64: 2>, scalar_prefetch = 0 : i64, scratch_operands = 0 : i64, tpu.core_type = #tpu.core_type<tc>, window_params = [{transform_indices = @transform_0, window_bounds = array<i64: 512, 128>}, {pipeline_mode = #tpu.pipeline_mode<synchronous>, transform_indices = @transform_1, window_bounds = array<i64: 128, 128>}, {pipeline_mode = #tpu.pipeline_mode<synchronous>, transform_indices = @transform_2, window_bounds = array<i64: 128, 128>}, {pipeline_mode = #tpu.pipeline_mode<synchronous>, transform_indices = @transform_3, window_bounds = array<i64: 1, 128>}, {pipeline_mode = #tpu.pipeline_mode<synchronous>, transform_indices = @transform_4, window_bounds = array<i64: 128, 128>}, {pipeline_mode = #tpu.pipeline_mode<synchronous>, transform_indices = @transform_5, window_bounds = array<i64: 1, 128>}, {pipeline_mode = #tpu.pipeline_mode<synchronous>, transform_indices = @transform_6, window_bounds = array<i64: 128, 128>}, {pipeline_mode = #tpu.pipeline_mode<synchronous>, transform_indices = @transform_7, window_bounds = array<i64: 1, 128>}, {transform_indices = @transform_8, window_bounds = array<i64: 512, 128>}]} {
    %c0_i32 = arith.constant 0 : i32
    %c4_i32 = arith.constant 4 : i32
    %0 = arith.addi %c0_i32, %c4_i32 : i32
    %c1_i32 = arith.constant 1 : i32
    scf.for %arg10 = %c0_i32 to %0 step %c1_i32  : i32 {
      %c1_i32_1 = arith.constant 1 : i32
      %1 = arith.muli %arg10, %c1_i32_1 : i32
      %c0_i32_2 = arith.constant 0 : i32
      %2 = arith.addi %c0_i32_2, %1 : i32
      %c128_i32 = arith.constant 128 : i32
      %3 = arith.muli %2, %c128_i32 : i32
      %4 = tpu.assume_multiple %3, 128 : i32
      %5 = arith.index_cast %4 : i32 to index
      %c0 = arith.constant 0 : index
      %6 = vector.load %arg1[%5, %c0] : memref<512x128xbf16, #tpu.memory_space<vmem>>, vector<128x128xbf16>
      %c0_3 = arith.constant 0 : index
      %c0_4 = arith.constant 0 : index
      %7 = vector.load %arg2[%c0_3, %c0_4] : memref<128x128xbf16, #tpu.memory_space<vmem>>, vector<128x128xbf16>
      %cst = arith.constant dense<0.000000e+00> : vector<128x128xf32>
      %8 = tpu.matmul %6, %7, %cst {dimension_numbers = #tpu.dot_dimension_numbers<[1], [0], [0], [1], [0, 0, 1, 1], [], []>} : vector<128x128xbf16>, vector<128x128xbf16>, vector<128x128xf32> -> vector<128x128xf32>
      %9 = arith.mulf %8, %8 : vector<128x128xf32>
      %cst_5 = arith.constant 9.99999974E-6 : f32
      %10 = vector.broadcast %cst_5 : f32 to vector<128x128xf32>
      %11 = arith.addf %9, %10 : vector<128x128xf32>
      %12 = math.log %11 : vector<128x128xf32>
      %13 = arith.truncf %12 : vector<128x128xf32> to vector<128x128xbf16>
      %c0_6 = arith.constant 0 : index
      %c0_7 = arith.constant 0 : index
      %14 = vector.load %arg3[%c0_6, %c0_7] : memref<128x128xbf16, #tpu.memory_space<vmem>>, vector<128x128xbf16>
      %cst_8 = arith.constant dense<0.000000e+00> : vector<128x128xf32>
      %15 = tpu.matmul %13, %14, %cst_8 {dimension_numbers = #tpu.dot_dimension_numbers<[1], [0], [0], [1], [0, 0, 1, 1], [], []>} : vector<128x128xbf16>, vector<128x128xbf16>, vector<128x128xf32> -> vector<128x128xf32>
      %c0_9 = arith.constant 0 : index
      %c0_10 = arith.constant 0 : index
      %16 = vector.load %arg4[%c0_9, %c0_10] : memref<1x128xf32, #tpu.memory_space<vmem>>, vector<1x128xf32>
      %17 = vector.broadcast %16 : vector<1x128xf32> to vector<128x128xf32>
      %18 = arith.addf %15, %17 : vector<128x128xf32>
      %cst_11 = arith.constant 0.000000e+00 : f32
      %19 = vector.broadcast %cst_11 : f32 to vector<128x128xf32>
      %20 = arith.maximumf %18, %19 : vector<128x128xf32>
      %21 = arith.truncf %20 : vector<128x128xf32> to vector<128x128xbf16>
      %c0_12 = arith.constant 0 : index
      %c0_13 = arith.constant 0 : index
      %22 = vector.load %arg5[%c0_12, %c0_13] : memref<128x128xbf16, #tpu.memory_space<vmem>>, vector<128x128xbf16>
      %cst_14 = arith.constant dense<0.000000e+00> : vector<128x128xf32>
      %23 = tpu.matmul %21, %22, %cst_14 {dimension_numbers = #tpu.dot_dimension_numbers<[1], [0], [0], [1], [0, 0, 1, 1], [], []>} : vector<128x128xbf16>, vector<128x128xbf16>, vector<128x128xf32> -> vector<128x128xf32>
      %c0_15 = arith.constant 0 : index
      %c0_16 = arith.constant 0 : index
      %24 = vector.load %arg6[%c0_15, %c0_16] : memref<1x128xf32, #tpu.memory_space<vmem>>, vector<1x128xf32>
      %25 = vector.broadcast %24 : vector<1x128xf32> to vector<128x128xf32>
      %26 = arith.addf %23, %25 : vector<128x128xf32>
      %cst_17 = arith.constant 0.000000e+00 : f32
      %27 = vector.broadcast %cst_17 : f32 to vector<128x128xf32>
      %28 = arith.maximumf %26, %27 : vector<128x128xf32>
      %29 = arith.truncf %28 : vector<128x128xf32> to vector<128x128xbf16>
      %c0_18 = arith.constant 0 : index
      %c0_19 = arith.constant 0 : index
      %30 = vector.load %arg7[%c0_18, %c0_19] : memref<128x128xbf16, #tpu.memory_space<vmem>>, vector<128x128xbf16>
      %cst_20 = arith.constant dense<0.000000e+00> : vector<128x128xf32>
      %31 = tpu.matmul %29, %30, %cst_20 {dimension_numbers = #tpu.dot_dimension_numbers<[1], [0], [0], [1], [0, 0, 1, 1], [], []>} : vector<128x128xbf16>, vector<128x128xbf16>, vector<128x128xf32> -> vector<128x128xf32>
      %c0_21 = arith.constant 0 : index
      %c0_22 = arith.constant 0 : index
      %32 = vector.load %arg8[%c0_21, %c0_22] : memref<1x128xf32, #tpu.memory_space<vmem>>, vector<1x128xf32>
      %33 = vector.broadcast %32 : vector<1x128xf32> to vector<128x128xf32>
      %34 = arith.addf %31, %33 : vector<128x128xf32>
      %cst_23 = arith.constant dense<0xFF800000> : vector<128xf32>
      %35 = vector.multi_reduction <maximumf>, %34, %cst_23 [1] : vector<128x128xf32> to vector<128xf32>
      %36 = vector.shape_cast %35 : vector<128xf32> to vector<128x1xf32>
      %37 = vector.broadcast %36 : vector<128x1xf32> to vector<128x128xf32>
      %38 = arith.subf %34, %37 : vector<128x128xf32>
      %39 = math.exp %38 : vector<128x128xf32>
      %cst_24 = arith.constant dense<0.000000e+00> : vector<128xf32>
      %40 = vector.multi_reduction <add>, %39, %cst_24 [1] : vector<128x128xf32> to vector<128xf32>
      %41 = vector.shape_cast %40 : vector<128xf32> to vector<128x1xf32>
      %42 = math.log %41 : vector<128x1xf32>
      %43 = arith.addf %42, %36 : vector<128x1xf32>
      %44 = vector.broadcast %43 : vector<128x1xf32> to vector<128x128xf32>
      %45 = arith.subf %34, %44 : vector<128x128xf32>
      %46 = arith.index_cast %4 : i32 to index
      %c0_25 = arith.constant 0 : index
      %47 = vector.load %arg9[%46, %c0_25] : memref<512x128xf32, #tpu.memory_space<vmem>>, vector<128x128xf32>
      tpu.vector_store %arg9[%46, %c0_25], %45 {strides = array<i32>} : memref<512x128xf32, #tpu.memory_space<vmem>>, vector<128x128xf32>,
    }
    %c4_i32_0 = arith.constant 4 : i32
    return
  }
  func.func @transform_0(%arg0: i32) -> (i32, i32) {
    %c0_i32 = arith.constant 0 : i32
    %c0_i32_0 = arith.constant 0 : i32
    return %arg0, %c0_i32 : i32, i32
  }
  func.func @transform_1(%arg0: i32) -> (i32, i32) {
    %c0_i32 = arith.constant 0 : i32
    %c0_i32_0 = arith.constant 0 : i32
    %c0_i32_1 = arith.constant 0 : i32
    return %c0_i32, %c0_i32_0 : i32, i32
  }
  func.func @transform_2(%arg0: i32) -> (i32, i32) {
    %c0_i32 = arith.constant 0 : i32
    %c0_i32_0 = arith.constant 0 : i32
    %c0_i32_1 = arith.constant 0 : i32
    return %c0_i32, %c0_i32_0 : i32, i32
  }
  func.func @transform_3(%arg0: i32) -> (i32, i32) {
    %c0_i32 = arith.constant 0 : i32
    %c0_i32_0 = arith.constant 0 : i32
    %c0_i32_1 = arith.constant 0 : i32
    return %c0_i32, %c0_i32_0 : i32, i32
  }
  func.func @transform_4(%arg0: i32) -> (i32, i32) {
    %c0_i32 = arith.constant 0 : i32
    %c0_i32_0 = arith.constant 0 : i32
    %c0_i32_1 = arith.constant 0 : i32
    return %c0_i32, %c0_i32_0 : i32, i32
  }
  func.func @transform_5(%arg0: i32) -> (i32, i32) {
    %c0_i32 = arith.constant 0 : i32
    %c0_i32_0 = arith.constant 0 : i32
    %c0_i32_1 = arith.constant 0 : i32
    return %c0_i32, %c0_i32_0 : i32, i32
  }
  func.func @transform_6(%arg0: i32) -> (i32, i32) {
    %c0_i32 = arith.constant 0 : i32
    %c0_i32_0 = arith.constant 0 : i32
    %c0_i32_1 = arith.constant 0 : i32
    return %c0_i32, %c0_i32_0 : i32, i32
  }
  func.func @transform_7(%arg0: i32) -> (i32, i32) {
    %c0_i32 = arith.constant 0 : i32
    %c0_i32_0 = arith.constant 0 : i32
    %c0_i32_1 = arith.constant 0 : i32
    return %c0_i32, %c0_i32_0 : i32, i32
  }
  func.func @transform_8(%arg0: i32) -> (i32, i32) {
    %c0_i32 = arith.constant 0 : i32
    %c0_i32_0 = arith.constant 0 : i32
    return %arg0, %c0_i32 : i32, i32
  }
}

</mosaic_0001>

<llo_original>
// kernel: asr_nemo_forward.1
$region0: #{asr_nemo_forward.1}
  #allocation0 [shape = 'u32[]', space=smem, size = 0x4, offset = 0x4, fixed_abs, tag = 'smem constant byte address 0x4 - core index']
  #allocation1 [shape = 'u32[144,128]{1,0:T(1,128)}', space=vmem, size = 0x12000, scoped, tag = 'internal scratch']
  %s0 = inlined_call_operand.vmem [shape: bf16[1024,128], index: 0, kind: input, shape index: {}]
  %s1 = inlined_call_operand.vmem [shape: bf16[128,128], index: 1, kind: input, shape index: {}]
  %s2 = inlined_call_operand.vmem [shape: bf16[128,128], index: 2, kind: input, shape index: {}]
  %s3 = inlined_call_operand.vmem [shape: f32[1,128], index: 3, kind: input, shape index: {}]
  %s4 = inlined_call_operand.vmem [shape: bf16[128,128], index: 4, kind: input, shape index: {}]
  %s5 = inlined_call_operand.vmem [shape: f32[1,128], index: 5, kind: input, shape index: {}]
  %s6 = inlined_call_operand.vmem [shape: bf16[128,128], index: 6, kind: input, shape index: {}]
  %s7 = inlined_call_operand.vmem [shape: f32[1,128], index: 7, kind: input, shape index: {}]
  %s8 = inlined_call_operand.hbm [shape: f32[1024,128], index: 8, kind: output, shape index: {}]
  %s9 = sld [smem:[#allocation0]]
  $region72: #{asr_nemo_forward.1} parent=0
    _
  %s11 = ssub.s32 1, %s9
  %s12 = scalar_select 0, %s11, %s9
  $region1: #{asr_nemo_forward.1} parent=0
    #allocation2 [shape = 'u8[524288]{0}', space=vmem, size = 0x80000, scoped, tag = 'output window, operand 0']
    #allocation3 [shape = 's32[2]{0}', space=sflag, size = 0x8, scoped, tag = 'scoped memory for asr_nemo_forward.1']
    %13 = vsyncpa [#allocation3], 0
    %s14 = scalar_lea.sflag [#allocation3], 1
    %15 = vsyncpa %s14, 0
    loop: start=0, step=1, limit=4
    $region2: #{asr_nemo_forward.1} parent=1 // loop_pre_header
      _
    $region3: #{asr_nemo_forward.1} parent=1 // loop_header
      %s17 = sphi 0, %s21
      %p18 = scmp.ge.s32.totalorder %s17, 4
      %s27 = sphi 0, %s29
      %s30 = sphi 0, %s27
      %s31 = sphi 0, %s30
      %s47 = sphi 0, %s31
      %s51 = sphi 0, %s51
      %s53 = sphi 0, %s51
      %s54 = sphi 0, %s53
      %s68 = sphi 0, %s54
      %s72 = sphi 0, %s72
      %s74 = sphi 0, %s72
      %s75 = sphi 0, %s74
      %s89 = sphi 0, %s75
      %s93 = sphi 0, %s93
      %s95 = sphi 0, %s93
      %s96 = sphi 0, %s95
      %s110 = sphi 0, %s96
      %s114 = sphi 0, %s114
      %s116 = sphi 0, %s114
      %s117 = sphi 0, %s116
      %s131 = sphi 0, %s117
      %s135 = sphi 0, %s135
      %s137 = sphi 0, %s135
      %s138 = sphi 0, %s137
      %s152 = sphi 0, %s138
      %s156 = sphi 0, %s156
      %s158 = sphi 0, %s156
      %s159 = sphi 0, %s158
      %s173 = sphi 0, %s159
      %s177 = sphi 0, %s177
      %s179 = sphi 0, %s177
      %s180 = sphi 0, %s179
      %s194 = sphi 0, %s180
      %s200 = sphi 0, %s202
      %s203 = sphi 0, %s200
      %s204 = sphi 0, %s203
      %s220 = sphi 0, %s204
    $region4: #{asr_nemo_forward.1} parent=1 // loop_header_branch
      %20 = sbr.rel (%p18) target = $region8
    $region5: #{asr_nemo_forward.1} parent=1 // loop_body
      %s22 = ssub.s32 %s17, 1
      %s23 = ssub.s32 %s17, 2
      %s24 = sadd.s32 %s17, 1
      %s25 = ssub.s32 %s17, %s24
      %p26 = scmp.eq.s32.totalorder %s25, 0
      %s28 = sadd.s32 %s27, 1
      %s29 = scalar_select %p26, %s27, %s28
      %p32 = pneg %p26
      %p33 = scmp.eq.s32.totalorder %s17, 1
      %p34 = por %p32, %p33
      %p35 = scmp.ne.s32.totalorder %s27, %s30
      %p36 = scmp.eq.s32.totalorder %s17, 0
      %p37 = por %p35, %p36
      %p38 = scmp.ne.s32.totalorder %s27, %s30
      %p39 = scmp.eq.s32.totalorder %s22, 1
      %p40 = por %p38, %p39
      %p41 = scmp.ne.s32.totalorder %s30, %s31
      %p42 = scmp.eq.s32.totalorder %s22, 0
      %p43 = por %p41, %p42
      %p44 = scmp.ne.s32.totalorder %s30, %s31
      %p45 = scmp.eq.s32.totalorder %s23, 1
      %p46 = por %p44, %p45
      %p48 = scmp.ne.s32.totalorder %s31, %s47
      %p49 = scmp.eq.s32.totalorder %s23, 0
      %p50 = por %p48, %p49
      %s52 = sadd.s32 %s51, 1
      %p55 = scmp.eq.s32.totalorder %s17, 1
      %p56 = scmp.ne.s32.totalorder %s51, %s53
      %p57 = scmp.eq.s32.totalorder %s17, 0
      %p58 = por %p56, %p57
      %p59 = scmp.ne.s32.totalorder %s51, %s53
      %p60 = scmp.eq.s32.totalorder %s22, 1
      %p61 = por %p59, %p60
      %p62 = scmp.ne.s32.totalorder %s53, %s54
      %p63 = scmp.eq.s32.totalorder %s22, 0
      %p64 = por %p62, %p63
      %p65 = scmp.ne.s32.totalorder %s53, %s54
      %p66 = scmp.eq.s32.totalorder %s23, 1
      %p67 = por %p65, %p66
      %p69 = scmp.ne.s32.totalorder %s54, %s68
      %p70 = scmp.eq.s32.totalorder %s23, 0
      %p71 = por %p69, %p70
      %s73 = sadd.s32 %s72, 1
      %p76 = scmp.eq.s32.totalorder %s17, 1
      %p77 = scmp.ne.s32.totalorder %s72, %s74
      %p78 = scmp.eq.s32.totalorder %s17, 0
      %p79 = por %p77, %p78
      %p80 = scmp.ne.s32.totalorder %s72, %s74
      %p81 = scmp.eq.s32.totalorder %s22, 1
      %p82 = por %p80, %p81
      %p83 = scmp.ne.s32.totalorder %s74, %s75
      %p84 = scmp.eq.s32.totalorder %s22, 0
      %p85 = por %p83, %p84
      %p86 = scmp.ne.s32.totalorder %s74, %s75
      %p87 = scmp.eq.s32.totalorder %s23, 1
      %p88 = por %p86, %p87
      %p90 = scmp.ne.s32.totalorder %s75, %s89
      %p91 = scmp.eq.s32.totalorder %s23, 0
      %p92 = por %p90, %p91
      %s94 = sadd.s32 %s93, 1
      %p97 = scmp.eq.s32.totalorder %s17, 1
      %p98 = scmp.ne.s32.totalorder %s93, %s95
      %p99 = scmp.eq.s32.totalorder %s17, 0
      %p100 = por %p98, %p99
      %p101 = scmp.ne.s32.totalorder %s93, %s95
      %p102 = scmp.eq.s32.totalorder %s22, 1
      %p103 = por %p101, %p102
      %p104 = scmp.ne.s32.totalorder %s95, %s96
      %p105 = scmp.eq.s32.totalorder %s22, 0
      %p106 = por %p104, %p105
      %p107 = scmp.ne.s32.totalorder %s95, %s96
      %p108 = scmp.eq.s32.totalorder %s23, 1
      %p109 = por %p107, %p108
      %p111 = scmp.ne.s32.totalorder %s96, %s110
      %p112 = scmp.eq.s32.totalorder %s23, 0
      %p113 = por %p111, %p112
      %s115 = sadd.s32 %s114, 1
      %p118 = scmp.eq.s32.totalorder %s17, 1
      %p119 = scmp.ne.s32.totalorder %s114, %s116
      %p120 = scmp.eq.s32.totalorder %s17, 0
      %p121 = por %p119, %p120
      %p122 = scmp.ne.s32.totalorder %s114, %s116
      %p123 = scmp.eq.s32.totalorder %s22, 1
      %p124 = por %p122, %p123
      %p125 = scmp.ne.s32.totalorder %s116, %s117
      %p126 = scmp.eq.s32.totalorder %s22, 0
      %p127 = por %p125, %p126
      %p128 = scmp.ne.s32.totalorder %s116, %s117
      %p129 = scmp.eq.s32.totalorder %s23, 1
      %p130 = por %p128, %p129
      %p132 = scmp.ne.s32.totalorder %s117, %s131
      %p133 = scmp.eq.s32.totalorder %s23, 0
      %p134 = por %p132, %p133
      %s136 = sadd.s32 %s135, 1
      %p139 = scmp.eq.s32.totalorder %s17, 1
      %p140 = scmp.ne.s32.totalorder %s135, %s137
      %p141 = scmp.eq.s32.totalorder %s17, 0
      %p142 = por %p140, %p141
      %p143 = scmp.ne.s32.totalorder %s135, %s137
      %p144 = scmp.eq.s32.totalorder %s22, 1
      %p145 = por %p143, %p144
      %p146 = scmp.ne.s32.totalorder %s137, %s138
      %p147 = scmp.eq.s32.totalorder %s22, 0
      %p148 = por %p146, %p147
      %p149 = scmp.ne.s32.totalorder %s137, %s138
      %p150 = scmp.eq.s32.totalorder %s23, 1
      %p151 = por %p149, %p150
      %p153 = scmp.ne.s32.totalorder %s138, %s152
      %p154 = scmp.eq.s32.totalorder %s23, 0
      %p155 = por %p153, %p154
      %s157 = sadd.s32 %s156, 1
      %p160 = scmp.eq.s32.totalorder %s17, 1
      %p161 = scmp.ne.s32.totalorder %s156, %s158
      %p162 = scmp.eq.s32.totalorder %s17, 0
      %p163 = por %p161, %p162
      %p164 = scmp.ne.s32.totalorder %s156, %s158
      %p165 = scmp.eq.s32.totalorder %s22, 1
      %p166 = por %p164, %p165
      %p167 = scmp.ne.s32.totalorder %s158, %s159
      %p168 = scmp.eq.s32.totalorder %s22, 0
      %p169 = por %p167, %p168
      %p170 = scmp.ne.s32.totalorder %s158, %s159
      %p171 = scmp.eq.s32.totalorder %s23, 1
      %p172 = por %p170, %p171
      %p174 = scmp.ne.s32.totalorder %s159, %s173
      %p175 = scmp.eq.s32.totalorder %s23, 0
      %p176 = por %p174, %p175
      %s178 = sadd.s32 %s177, 1
      %p181 = scmp.eq.s32.totalorder %s17, 1
      %p182 = scmp.ne.s32.totalorder %s177, %s179
      %p183 = scmp.eq.s32.totalorder %s17, 0
      %p184 = por %p182, %p183
      %p185 = scmp.ne.s32.totalorder %s177, %s179
      %p186 = scmp.eq.s32.totalorder %s22, 1
      %p187 = por %p185, %p186
      %p188 = scmp.ne.s32.totalorder %s179, %s180
      %p189 = scmp.eq.s32.totalorder %s22, 0
      %p190 = por %p188, %p189
      %p191 = scmp.ne.s32.totalorder %s179, %s180
      %p192 = scmp.eq.s32.totalorder %s23, 1
      %p193 = por %p191, %p192
      %p195 = scmp.ne.s32.totalorder %s180, %s194
      %p196 = scmp.eq.s32.totalorder %s23, 0
      %p197 = por %p195, %p196
      %s198 = ssub.s32 %s17, %s24
      %p199 = scmp.eq.s32.totalorder %s198, 0
      %s201 = sadd.s32 %s200, 1
      %s202 = scalar_select %p199, %s200, %s201
      %p205 = pneg %p199
      %p206 = scmp.eq.s32.totalorder %s17, 1
      %p207 = por %p205, %p206
      %p208 = scmp.ne.s32.totalorder %s200, %s203
      %p209 = scmp.eq.s32.totalorder %s17, 0
      %p210 = por %p208, %p209
      %p211 = scmp.ne.s32.totalorder %s200, %s203
      %p212 = scmp.eq.s32.totalorder %s22, 1
      %p213 = por %p211, %p212
      %p214 = scmp.ne.s32.totalorder %s203, %s204
      %p215 = scmp.eq.s32.totalorder %s22, 0
      %p216 = por %p214, %p215
      %p217 = scmp.ne.s32.totalorder %s203, %s204
      %p218 = scmp.eq.s32.totalorder %s23, 1
      %p219 = por %p217, %p218
      %p221 = scmp.ne.s32.totalorder %s204, %s220
      %p222 = scmp.eq.s32.totalorder %s23, 0
      %p223 = por %p221, %p222
      %p224 = scmp.le.s32.totalorder 1, %s17
      %p225 = scmp.lt.s32.totalorder %s17, 3
      %p226 = pnand %p224, %p225
      %p227 = pneg %p226
      // Predicated region
      $region9: #{asr_nemo_forward.1} parent=5 // pred_check
        _
      $region10: #{asr_nemo_forward.1} parent=5 // pred_check_branch
        %229 = sbr.rel (%p226) target = $region12
      $region11: #{asr_nemo_forward.1} parent=5 // pred_region
        %s230 = ssub.s32 %s17, 1
        // Predicated region
        $region13: #{asr_nemo_forward.1} parent=11 // pred_check
          %p231 = pneg %p64
        $region14: #{asr_nemo_forward.1} parent=11 // pred_check_branch
          %233 = sbr.rel (%p231) target = $region16
        $region15: #{asr_nemo_forward.1} parent=11 // pred_region
          _
        $region16: #{asr_nemo_forward.1} parent=11 // pred_fallthru
          _
        // Predicated region
        $region17: #{asr_nemo_forward.1} parent=11 // pred_check
          %p234 = pneg %p85
        $region18: #{asr_nemo_forward.1} parent=11 // pred_check_branch
          %236 = sbr.rel (%p234) target = $region20
        $region19: #{asr_nemo_forward.1} parent=11 // pred_region
          _
        $region20: #{asr_nemo_forward.1} parent=11 // pred_fallthru
          _
        // Predicated region
        $region21: #{asr_nemo_forward.1} parent=11 // pred_check
          %p237 = pneg %p106
        $region22: #{asr_nemo_forward.1} parent=11 // pred_check_branch
          %239 = sbr.rel (%p237) target = $region24
        $region23: #{asr_nemo_forward.1} parent=11 // pred_region
          _
        $region24: #{asr_nemo_forward.1} parent=11 // pred_fallthru
          _
        // Predicated region
        $region25: #{asr_nemo_forward.1} parent=11 // pred_check
          %p240 = pneg %p127
        $region26: #{asr_nemo_forward.1} parent=11 // pred_check_branch
          %242 = sbr.rel (%p240) target = $region28
        $region27: #{asr_nemo_forward.1} parent=11 // pred_region
          _
        $region28: #{asr_nemo_forward.1} parent=11 // pred_fallthru
          _
        // Predicated region
        $region29: #{asr_nemo_forward.1} parent=11 // pred_check
          %p243 = pneg %p148
        $region30: #{asr_nemo_forward.1} parent=11 // pred_check_branch
          %245 = sbr.rel (%p243) target = $region32
        $region31: #{asr_nemo_forward.1} parent=11 // pred_region
          _
        $region32: #{asr_nemo_forward.1} parent=11 // pred_fallthru
          _
        // Predicated region
        $region33: #{asr_nemo_forward.1} parent=11 // pred_check
          %p246 = pneg %p169
        $region34: #{asr_nemo_forward.1} parent=11 // pred_check_branch
          %248 = sbr.rel (%p246) target = $region36
        $region35: #{asr_nemo_forward.1} parent=11 // pred_region
          _
        $region36: #{asr_nemo_forward.1} parent=11 // pred_fallthru
          _
        // Predicated region
        $region37: #{asr_nemo_forward.1} parent=11 // pred_check
          %p249 = pneg %p190
        $region38: #{asr_nemo_forward.1} parent=11 // pred_check_branch
          %251 = sbr.rel (%p249) target = $region40
        $region39: #{asr_nemo_forward.1} parent=11 // pred_region
          _
        $region40: #{asr_nemo_forward.1} parent=11 // pred_fallthru
          _
      $region12: #{asr_nemo_forward.1} parent=5 // pred_fallthru
        _
      %p252 = scmp.lt.s32.totalorder %s17, 2
      // Predicated region
      $region41: #{asr_nemo_forward.1} parent=5 // pred_check
        %p253 = pneg %p252
      $region42: #{asr_nemo_forward.1} parent=5 // pred_check_branch
        %255 = sbr.rel (%p253) target = $region44
      $region43: #{asr_nemo_forward.1} parent=5 // pred_region
        // Predicated region
        $region45: #{asr_nemo_forward.1} parent=43 // pred_check
          %p256 = pneg %p37
        $region46: #{asr_nemo_forward.1} parent=43 // pred_check_branch
          %258 = sbr.rel (%p256) target = $region48
        $region47: #{asr_nemo_forward.1} parent=43 // pred_region
          %s259 = smul.u32 64, %s17
          %p260 = scmp.lt.s32.totalorder %s259, 127
          %s261 = scalar_select %p260, %s259, 127
          %s262 = smul.addr %s261, 4
          %s263 = scalar_lea.vmem %s0, %s262
          %s264 = smul.u32 64, %s17
        $region48: #{asr_nemo_forward.1} parent=43 // pred_fallthru
          _
      $region44: #{asr_nemo_forward.1} parent=5 // pred_fallthru
        _
      %p265 = scmp.le.s32.totalorder 1, %s17
      %p266 = scmp.lt.s32.totalorder %s17, 3
      %p267 = pnand %p265, %p266
      %p268 = pneg %p267
      // Predicated region
      $region49: #{asr_nemo_forward.1} parent=5 // pred_check
        _
      $region50: #{asr_nemo_forward.1} parent=5 // pred_check_branch
        %270 = sbr.rel (%p267) target = $region52
      $region51: #{asr_nemo_forward.1} parent=5 // pred_region
        %s271 = ssub.s32 %s17, 1
        %s272 = smul.u32 64, %s22
        %p273 = scmp.lt.s32.totalorder %s272, 127
        %s274 = scalar_select %p273, %s272, 127
        %s275 = smul.addr %s274, 4
        %s276 = scalar_lea.vmem %s0, %s275
        %p277 = pneg %p43
        %p278 = pneg %p40
        %p279 = pneg %p64
        %p280 = pneg %p61
        %p281 = pneg %p85
        %p282 = pneg %p82
        %p283 = pneg %p106
        %p284 = pneg %p103
        %p285 = pneg %p127
        %p286 = pneg %p124
        %p287 = pneg %p148
        %p288 = pneg %p145
        %p289 = pneg %p169
        %p290 = pneg %p166
        %p291 = pneg %p190
        %p292 = pneg %p187
        %p293 = pneg %p216
        %p294 = pneg %p213
        %s295 = sand.u32 %s203, 1
        %s296 = scalar_lea.sflag [#allocation3], %s295
        %s297 = sand.u32 %s203, 1
        %s298 = smul.addr %s297, 512
        %s299 = scalar_lea.vmem [#allocation2], %s298
        %s300 = smul.u32 64, %s22
        %p301 = scmp.lt.s32.totalorder %s300, 127
        %s302 = scalar_select %p301, %s300, 127
        %s303 = smul.addr %s302, 4
        %s304 = scalar_lea.vmem %s0, %s303
        %s305 = smul.u32 64, %s22
        %s306 = smul.u32 64, %s22
        loop: start=0, step=1, limit=4
        $region53: #{asr_nemo_forward.1} parent=51 // loop_pre_header
          _
        $region54: #{asr_nemo_forward.1} parent=51 // loop_header
          %s309 = sphi 0, %s313
          %p310 = scmp.ge.s32.totalorder %s309, 4
        $region55: #{asr_nemo_forward.1} parent=51 // loop_header_branch
          %312 = sbr.rel (%p310) target = $region59
        $region56: #{asr_nemo_forward.1} parent=51 // loop_body
          %s314 = smul.u32 %s309, 128
          %s315 = sshra.s32 %s314, 3
          %s316 = sand.u32 %s314, 7
          %s317 = smul.addr %s315, 4
          %s318 = scalar_lea.vmem %s304, %s317
          %v319 = vld [vmem:[%s318] sm:$0xf]
          %v320 = vld [vmem:[%s318 + $0x4] sm:$0xf]
          %v321 = vld [vmem:[%s318 + $0x8] sm:$0xf]
          %v322 = vld [vmem:[%s318 + $0xc] sm:$0xf]
          %v323 = vld [vmem:[%s318 + $0x10] sm:$0xf]
          %v324 = vld [vmem:[%s318 + $0x14] sm:$0xf]
          %v325 = vld [vmem:[%s318 + $0x18] sm:$0xf]
          %v326 = vld [vmem:[%s318 + $0x1c] sm:$0xf]
          %v327 = vld [vmem:[%s318 + $0x20] sm:$0xf]
          %v328 = vld [vmem:[%s318 + $0x24] sm:$0xf]
          %v329 = vld [vmem:[%s318 + $0x28] sm:$0xf]
          %v330 = vld [vmem:[%s318 + $0x2c] sm:$0xf]
          %v331 = vld [vmem:[%s318 + $0x30] sm:$0xf]
          %v332 = vld [vmem:[%s318 + $0x34] sm:$0xf]
          %v333 = vld [vmem:[%s318 + $0x38] sm:$0xf]
          %v334 = vld [vmem:[%s318 + $0x3c] sm:$0xf]
          %v335 = vld [vmem:[%s1] sm:$0xf]
          %v336 = vld [vmem:[%s1 + $0x4] sm:$0xf]
          %v337 = vld [vmem:[%s1 + $0x8] sm:$0xf]
          %v338 = vld [vmem:[%s1 + $0xc] sm:$0xf]
          %v339 = vld [vmem:[%s1 + $0x10] sm:$0xf]
          %v340 = vld [vmem:[%s1 + $0x14] sm:$0xf]
          %v341 = vld [vmem:[%s1 + $0x18] sm:$0xf]
          %v342 = vld [vmem:[%s1 + $0x1c] sm:$0xf]
          %v343 = vld [vmem:[%s1 + $0x20] sm:$0xf]
          %v344 = vld [vmem:[%s1 + $0x24] sm:$0xf]
          %v345 = vld [vmem:[%s1 + $0x28] sm:$0xf]
          %v346 = vld [vmem:[%s1 + $0x2c] sm:$0xf]
          %v347 = vld [vmem:[%s1 + $0x30] sm:$0xf]
          %v348 = vld [vmem:[%s1 + $0x34] sm:$0xf]
          %v349 = vld [vmem:[%s1 + $0x38] sm:$0xf]
          %v350 = vld [vmem:[%s1 + $0x3c] sm:$0xf]
          %v367 = vunpack.c.l.b16 %v319
          %v368 = vunpack.c.l.b16 %v320
          %v369 = vunpack.c.l.b16 %v321
          %v370 = vunpack.c.l.b16 %v322
          %v371 = vunpack.c.l.b16 %v323
          %v372 = vunpack.c.l.b16 %v324
          %v373 = vunpack.c.l.b16 %v325
          %v374 = vunpack.c.l.b16 %v326
          %v375 = vunpack.c.l.b16 %v327
          %v376 = vunpack.c.l.b16 %v328
          %v377 = vunpack.c.l.b16 %v329
          %v378 = vunpack.c.l.b16 %v330
          %v379 = vunpack.c.l.b16 %v331
          %v380 = vunpack.c.l.b16 %v332
          %v381 = vunpack.c.l.b16 %v333
          %v382 = vunpack.c.l.b16 %v334
          %v383 = vpack.c.b16 %v368, %v367
          %v384 = vpack.c.b16 %v370, %v369
          %v385 = vpack.c.b16 %v372, %v371
          %v386 = vpack.c.b16 %v374, %v373
          %v387 = vpack.c.b16 %v376, %v375
          %v388 = vpack.c.b16 %v378, %v377
          %v389 = vpack.c.b16 %v380, %v379
          %v390 = vpack.c.b16 %v382, %v381
          %v415 = vunpack.c.l.b16 %v335
          %v416 = vunpack.c.l.b16 %v336
          %v417 = vunpack.c.l.b16 %v337
          %v418 = vunpack.c.l.b16 %v338
          %v419 = vunpack.c.l.b16 %v339
          %v420 = vunpack.c.l.b16 %v340
          %v421 = vunpack.c.l.b16 %v341
          %v422 = vunpack.c.l.b16 %v342
          %v423 = vunpack.c.l.b16 %v343
          %v424 = vunpack.c.l.b16 %v344
          %v425 = vunpack.c.l.b16 %v345
          %v426 = vunpack.c.l.b16 %v346
          %v427 = vunpack.c.l.b16 %v347
          %v428 = vunpack.c.l.b16 %v348
          %v429 = vunpack.c.l.b16 %v349
          %v430 = vunpack.c.l.b16 %v350
          %v431 = vpack.c.b16 %v416, %v415
          %v432 = vpack.c.b16 %v418, %v417
          %v433 = vpack.c.b16 %v420, %v419
          %v434 = vpack.c.b16 %v422, %v421
          %v435 = vpack.c.b16 %v424, %v423
          %v436 = vpack.c.b16 %v426, %v425
          %v437 = vpack.c.b16 %v428, %v427
          %v438 = vpack.c.b16 %v430, %v429
          %447 = vmatprep.subr.bf16.mxu0 0
          %448 = vmatpush1.bf16.msra.mxu0 %v431
          %449 = vmatprep.subr.bf16.mxu0 0
          %450 = vmatpush1.bf16.msra.mxu0 %v432
          %451 = vmatprep.subr.bf16.mxu0 0
          %452 = vmatpush1.bf16.msra.mxu0 %v433
          %453 = vmatprep.subr.bf16.mxu0 0
          %454 = vmatpush1.bf16.msra.mxu0 %v434
          %455 = vmatprep.subr.bf16.mxu0 0
          %456 = vmatpush1.bf16.msra.mxu0 %v435
          %457 = vmatprep.subr.bf16.mxu0 0
          %458 = vmatpush1.bf16.msra.mxu0 %v436
          %459 = vmatprep.subr.bf16.mxu0 0
          %460 = vmatpush1.bf16.msra.mxu0 %v437
          %461 = vmatprep.subr.bf16.mxu0 0
          %462 = vmatpush1.bf16.msra.mxu0 %v438
          %463 = vmatprep.subr.bf16.mxu0 0
          %464 = vmatpush1.bf16.msra.mxu0 0
          %465 = vmatprep.subr.bf16.mxu0 0
          %466 = vmatpush1.bf16.msra.mxu0 0
          %467 = vmatprep.subr.bf16.mxu0 0
          %468 = vmatpush1.bf16.msra.mxu0 0
          %469 = vmatprep.subr.bf16.mxu0 0
          %470 = vmatpush1.bf16.msra.mxu0 0
          %471 = vmatprep.subr.bf16.mxu0 0
          %472 = vmatpush1.bf16.msra.mxu0 0
          %473 = vmatprep.subr.bf16.mxu0 0
          %474 = vmatpush1.bf16.msra.mxu0 0
          %475 = vmatprep.subr.bf16.mxu0 0
          %476 = vmatpush1.bf16.msra.mxu0 0
          %477 = vmatprep.subr.bf16.mxu0 0
          %478 = vmatpush1.bf16.msra.mxu0 0
          %479 = vmatprep.mubr.bf16.mxu0 0
          %480 = vmatmul.mubr.bf16.gmra.mrb[0].mxu0 %v383
          %v481 = vpop.f32.mrb[0].mxu0
          %v482 = vadd.f32 0.0, %v481
          %v483 = vpop.f32.mrb[0].mxu0
          %v484 = vpop.f32.mrb[0].mxu0
          %v485 = vadd.f32 0.0, %v484
          %v486 = vpop.f32.mrb[0].mxu0
          %487 = vmatprep.mubr.bf16.mxu0 0
          %488 = vmatmul.mubr.bf16.gmra.mrb[0].mxu0 %v384
          %v489 = vpop.f32.mrb[0].mxu0
          %v490 = vadd.f32 0.0, %v489
          %v491 = vpop.f32.mrb[0].mxu0
          %v492 = vpop.f32.mrb[0].mxu0
          %v493 = vadd.f32 0.0, %v492
          %v494 = vpop.f32.mrb[0].mxu0
          %495 = vmatprep.mubr.bf16.mxu0 0
          %496 = vmatmul.mubr.bf16.gmra.mrb[0].mxu0 %v385
          %v497 = vpop.f32.mrb[0].mxu0
          %v498 = vadd.f32 0.0, %v497
          %v499 = vpop.f32.mrb[0].mxu0
          %v500 = vpop.f32.mrb[0].mxu0
          %v501 = vadd.f32 0.0, %v500
          %v502 = vpop.f32.mrb[0].mxu0
          %503 = vmatprep.mubr.bf16.mxu0 0
          %504 = vmatmul.mubr.bf16.gmra.mrb[0].mxu0 %v386
          %v505 = vpop.f32.mrb[0].mxu0
          %v506 = vadd.f32 0.0, %v505
          %v507 = vpop.f32.mrb[0].mxu0
          %v508 = vpop.f32.mrb[0].mxu0
          %v509 = vadd.f32 0.0, %v508
          %v510 = vpop.f32.mrb[0].mxu0
          %511 = vmatprep.mubr.bf16.mxu0 0
          %512 = vmatmul.mubr.bf16.gmra.mrb[0].mxu0 %v387
          %v513 = vpop.f32.mrb[0].mxu0
          %v514 = vadd.f32 0.0, %v513
          %v515 = vpop.f32.mrb[0].mxu0
          %v516 = vpop.f32.mrb[0].mxu0
          %v517 = vadd.f32 0.0, %v516
          %v518 = vpop.f32.mrb[0].mxu0
          %519 = vmatprep.mubr.bf16.mxu0 0
          %520 = vmatmul.mubr.bf16.gmra.mrb[0].mxu0 %v388
          %v521 = vpop.f32.mrb[0].mxu0
          %v522 = vadd.f32 0.0, %v521
          %v523 = vpop.f32.mrb[0].mxu0
          %v524 = vpop.f32.mrb[0].mxu0
          %v525 = vadd.f32 0.0, %v524
          %v526 = vpop.f32.mrb[0].mxu0
          %527 = vmatprep.mubr.bf16.mxu0 0
          %528 = vmatmul.mubr.bf16.gmra.mrb[0].mxu0 %v389
          %v529 = vpop.f32.mrb[0].mxu0
          %v530 = vadd.f32 0.0, %v529
          %v531 = vpop.f32.mrb[0].mxu0
          %v532 = vpop.f32.mrb[0].mxu0
          %v533 = vadd.f32 0.0, %v532
          %v534 = vpop.f32.mrb[0].mxu0
          %535 = vmatprep.mubr.bf16.mxu0 0
          %536 = vmatmul.mubr.bf16.gmra.mrb[0].mxu0 %v390
          %v537 = vpop.f32.mrb[0].mxu0
          %v538 = vadd.f32 0.0, %v537
          %v539 = vpop.f32.mrb[0].mxu0
          %v540 = vpop.f32.mrb[0].mxu0
          %v541 = vadd.f32 0.0, %v540
          %v542 = vpop.f32.mrb[0].mxu0
          %543 = vdwg.mxu0
          %v544 = vmul.f32 %v482, %v482
          %v545 = vmul.f32 %v485, %v485
          %v546 = vmul.f32 %v490, %v490
          %v547 = vmul.f32 %v493, %v493
          %v548 = vmul.f32 %v498, %v498
          %v549 = vmul.f32 %v501, %v501
          %v550 = vmul.f32 %v506, %v506
          %v551 = vmul.f32 %v509, %v509
          %v552 = vmul.f32 %v514, %v514
          %v553 = vmul.f32 %v517, %v517
          %v554 = vmul.f32 %v522, %v522
          %v555 = vmul.f32 %v525, %v525
          %v556 = vmul.f32 %v530, %v530
          %v557 = vmul.f32 %v533, %v533
          %v558 = vmul.f32 %v538, %v538
          %v559 = vmul.f32 %v541, %v541
          %v560 = vadd.f32 %v544, 1e-05
          %v561 = vadd.f32 %v545, 1e-05
          %v562 = vadd.f32 %v546, 1e-05
          %v563 = vadd.f32 %v547, 1e-05
          %v564 = vadd.f32 %v548, 1e-05
          %v565 = vadd.f32 %v549, 1e-05
          %v566 = vadd.f32 %v550, 1e-05
          %v567 = vadd.f32 %v551, 1e-05
          %v568 = vadd.f32 %v552, 1e-05
          %v569 = vadd.f32 %v553, 1e-05
          %v570 = vadd.f32 %v554, 1e-05
          %v571 = vadd.f32 %v555, 1e-05
          %v572 = vadd.f32 %v556, 1e-05
          %v573 = vadd.f32 %v557, 1e-05
          %v574 = vadd.f32 %v558, 1e-05
          %v575 = vadd.f32 %v559, 1e-05
          %v576 = vlog2.pop %v560
          %v577 = vmul.f32 %v576, 0.6931472
          %v578 = vlog2.pop %v561
          %v579 = vmul.f32 %v578, 0.6931472
          %v580 = vlog2.pop %v562
          %v581 = vmul.f32 %v580, 0.6931472
          %v582 = vlog2.pop %v563
          %v583 = vmul.f32 %v582, 0.6931472
          %v584 = vlog2.pop %v564
          %v585 = vmul.f32 %v584, 0.6931472
          %v586 = vlog2.pop %v565
          %v587 = vmul.f32 %v586, 0.6931472
          %v588 = vlog2.pop %v566
          %v589 = vmul.f32 %v588, 0.6931472
          %v590 = vlog2.pop %v567
          %v591 = vmul.f32 %v590, 0.6931472
          %v592 = vlog2.pop %v568
          %v593 = vmul.f32 %v592, 0.6931472
          %v594 = vlog2.pop %v569
          %v595 = vmul.f32 %v594, 0.6931472
          %v596 = vlog2.pop %v570
          %v597 = vmul.f32 %v596, 0.6931472
          %v598 = vlog2.pop %v571
          %v599 = vmul.f32 %v598, 0.6931472
          %v600 = vlog2.pop %v572
          %v601 = vmul.f32 %v600, 0.6931472
          %v602 = vlog2.pop %v573
          %v603 = vmul.f32 %v602, 0.6931472
          %v604 = vlog2.pop %v574
          %v605 = vmul.f32 %v604, 0.6931472
          %v606 = vlog2.pop %v575
          %v607 = vmul.f32 %v606, 0.6931472
          %v608 = vpack.c.bf16 %v579, %v577
          %v609 = vpack.c.bf16 %v583, %v581
          %v610 = vpack.c.bf16 %v587, %v585
          %v611 = vpack.c.bf16 %v591, %v589
          %v612 = vpack.c.bf16 %v595, %v593
          %v613 = vpack.c.bf16 %v599, %v597
          %v614 = vpack.c.bf16 %v603, %v601
          %v615 = vpack.c.bf16 %v607, %v605
          %v616 = vld [vmem:[%s2] sm:$0xf]
          %v617 = vld [vmem:[%s2 + $0x4] sm:$0xf]
          %v618 = vld [vmem:[%s2 + $0x8] sm:$0xf]
          %v619 = vld [vmem:[%s2 + $0xc] sm:$0xf]
          %v620 = vld [vmem:[%s2 + $0x10] sm:$0xf]
          %v621 = vld [vmem:[%s2 + $0x14] sm:$0xf]
          %v622 = vld [vmem:[%s2 + $0x18] sm:$0xf]
          %v623 = vld [vmem:[%s2 + $0x1c] sm:$0xf]
          %v624 = vld [vmem:[%s2 + $0x20] sm:$0xf]
          %v625 = vld [vmem:[%s2 + $0x24] sm:$0xf]
          %v626 = vld [vmem:[%s2 + $0x28] sm:$0xf]
          %v627 = vld [vmem:[%s2 + $0x2c] sm:$0xf]
          %v628 = vld [vmem:[%s2 + $0x30] sm:$0xf]
          %v629 = vld [vmem:[%s2 + $0x34] sm:$0xf]
          %v630 = vld [vmem:[%s2 + $0x38] sm:$0xf]
          %v631 = vld [vmem:[%s2 + $0x3c] sm:$0xf]
          %v632 = vld [vmem:[%s3] sm:$0x1]
          %v634 = vlaneseq
          %v635 = vshrl.u32 %v634, 7
          %v636 = vsub.s32 0, %v635
          %v637 = vrot.slane %v632, %v636
          %v655 = vunpack.c.l.b16 %v616
          %v656 = vunpack.c.l.b16 %v617
          %v657 = vunpack.c.l.b16 %v618
          %v658 = vunpack.c.l.b16 %v619
          %v659 = vunpack.c.l.b16 %v620
          %v660 = vunpack.c.l.b16 %v621
          %v661 = vunpack.c.l.b16 %v622
          %v662 = vunpack.c.l.b16 %v623
          %v663 = vunpack.c.l.b16 %v624
          %v664 = vunpack.c.l.b16 %v625
          %v665 = vunpack.c.l.b16 %v626
          %v666 = vunpack.c.l.b16 %v627
          %v667 = vunpack.c.l.b16 %v628
          %v668 = vunpack.c.l.b16 %v629
          %v669 = vunpack.c.l.b16 %v630
          %v670 = vunpack.c.l.b16 %v631
          %v671 = vpack.c.b16 %v656, %v655
          %v672 = vpack.c.b16 %v658, %v657
          %v673 = vpack.c.b16 %v660, %v659
          %v674 = vpack.c.b16 %v662, %v661
          %v675 = vpack.c.b16 %v664, %v663
          %v676 = vpack.c.b16 %v666, %v665
          %v677 = vpack.c.b16 %v668, %v667
          %v678 = vpack.c.b16 %v670, %v669
          %687 = vmatprep.subr.bf16.mxu0 0
          %688 = vmatpush1.bf16.msra.mxu0 %v671
          %689 = vmatprep.subr.bf16.mxu0 0
          %690 = vmatpush1.bf16.msra.mxu0 %v672
          %691 = vmatprep.subr.bf16.mxu0 0
          %692 = vmatpush1.bf16.msra.mxu0 %v673
          %693 = vmatprep.subr.bf16.mxu0 0
          %694 = vmatpush1.bf16.msra.mxu0 %v674
          %695 = vmatprep.subr.bf16.mxu0 0
          %696 = vmatpush1.bf16.msra.mxu0 %v675
          %697 = vmatprep.subr.bf16.mxu0 0
          %698 = vmatpush1.bf16.msra.mxu0 %v676
          %699 = vmatprep.subr.bf16.mxu0 0
          %700 = vmatpush1.bf16.msra.mxu0 %v677
          %701 = vmatprep.subr.bf16.mxu0 0
          %702 = vmatpush1.bf16.msra.mxu0 %v678
          %703 = vmatprep.subr.bf16.mxu0 0
          %704 = vmatpush1.bf16.msra.mxu0 0
          %705 = vmatprep.subr.bf16.mxu0 0
          %706 = vmatpush1.bf16.msra.mxu0 0
          %707 = vmatprep.subr.bf16.mxu0 0
          %708 = vmatpush1.bf16.msra.mxu0 0
          %709 = vmatprep.subr.bf16.mxu0 0
          %710 = vmatpush1.bf16.msra.mxu0 0
          %711 = vmatprep.subr.bf16.mxu0 0
          %712 = vmatpush1.bf16.msra.mxu0 0
          %713 = vmatprep.subr.bf16.mxu0 0
          %714 = vmatpush1.bf16.msra.mxu0 0
          %715 = vmatprep.subr.bf16.mxu0 0
          %716 = vmatpush1.bf16.msra.mxu0 0
          %717 = vmatprep.subr.bf16.mxu0 0
          %718 = vmatpush1.bf16.msra.mxu0 0
          %719 = vmatprep.mubr.bf16.mxu0 0
          %720 = vmatmul.mubr.bf16.gmra.mrb[0].mxu0 %v608
          %v721 = vpop.f32.mrb[0].mxu0
          %v722 = vadd.f32 %v637, %v721
          %v723 = vpop.f32.mrb[0].mxu0
          %v724 = vpop.f32.mrb[0].mxu0
          %v725 = vadd.f32 %v637, %v724
          %v726 = vpop.f32.mrb[0].mxu0
          %727 = vmatprep.mubr.bf16.mxu0 0
          %728 = vmatmul.mubr.bf16.gmra.mrb[0].mxu0 %v609
          %v729 = vpop.f32.mrb[0].mxu0
          %v730 = vadd.f32 %v637, %v729
          %v731 = vpop.f32.mrb[0].mxu0
          %v732 = vpop.f32.mrb[0].mxu0
          %v733 = vadd.f32 %v637, %v732
          %v734 = vpop.f32.mrb[0].mxu0
          %735 = vmatprep.mubr.bf16.mxu0 0
          %736 = vmatmul.mubr.bf16.gmra.mrb[0].mxu0 %v610
          %v737 = vpop.f32.mrb[0].mxu0
          %v738 = vadd.f32 %v637, %v737
          %v739 = vpop.f32.mrb[0].mxu0
          %v740 = vpop.f32.mrb[0].mxu0
          %v741 = vadd.f32 %v637, %v740
          %v742 = vpop.f32.mrb[0].mxu0
          %743 = vmatprep.mubr.bf16.mxu0 0
          %744 = vmatmul.mubr.bf16.gmra.mrb[0].mxu0 %v611
          %v745 = vpop.f32.mrb[0].mxu0
          %v746 = vadd.f32 %v637, %v745
          %v747 = vpop.f32.mrb[0].mxu0
          %v748 = vpop.f32.mrb[0].mxu0
          %v749 = vadd.f32 %v637, %v748
          %v750 = vpop.f32.mrb[0].mxu0
          %751 = vmatprep.mubr.bf16.mxu0 0
          %752 = vmatmul.mubr.bf16.gmra.mrb[0].mxu0 %v612
          %v753 = vpop.f32.mrb[0].mxu0
          %v754 = vadd.f32 %v637, %v753
          %v755 = vpop.f32.mrb[0].mxu0
          %v756 = vpop.f32.mrb[0].mxu0
          %v757 = vadd.f32 %v637, %v756
          %v758 = vpop.f32.mrb[0].mxu0
          %759 = vmatprep.mubr.bf16.mxu0 0
          %760 = vmatmul.mubr.bf16.gmra.mrb[0].mxu0 %v613
          %v761 = vpop.f32.mrb[0].mxu0
          %v762 = vadd.f32 %v637, %v761
          %v763 = vpop.f32.mrb[0].mxu0
          %v764 = vpop.f32.mrb[0].mxu0
          %v765 = vadd.f32 %v637, %v764
          %v766 = vpop.f32.mrb[0].mxu0
          %767 = vmatprep.mubr.bf16.mxu0 0
          %768 = vmatmul.mubr.bf16.gmra.mrb[0].mxu0 %v614
          %v769 = vpop.f32.mrb[0].mxu0
          %v770 = vadd.f32 %v637, %v769
          %v771 = vpop.f32.mrb[0].mxu0
          %v772 = vpop.f32.mrb[0].mxu0
          %v773 = vadd.f32 %v637, %v772
          %v774 = vpop.f32.mrb[0].mxu0
          %775 = vmatprep.mubr.bf16.mxu0 0
          %776 = vmatmul.mubr.bf16.gmra.mrb[0].mxu0 %v615
          %v777 = vpop.f32.mrb[0].mxu0
          %v778 = vadd.f32 %v637, %v777
          %v779 = vpop.f32.mrb[0].mxu0
          %v780 = vpop.f32.mrb[0].mxu0
          %v781 = vadd.f32 %v637, %v780
          %v782 = vpop.f32.mrb[0].mxu0
          %783 = vdwg.mxu0
          %v784 = vmax.f32 %v722, 0.0
          %v785 = vmax.f32 %v725, 0.0
          %v786 = vmax.f32 %v730, 0.0
          %v787 = vmax.f32 %v733, 0.0
          %v788 = vmax.f32 %v738, 0.0
          %v789 = vmax.f32 %v741, 0.0
          %v790 = vmax.f32 %v746, 0.0
          %v791 = vmax.f32 %v749, 0.0
          %v792 = vmax.f32 %v754, 0.0
          %v793 = vmax.f32 %v757, 0.0
          %v794 = vmax.f32 %v762, 0.0
          %v795 = vmax.f32 %v765, 0.0
          %v796 = vmax.f32 %v770, 0.0
          %v797 = vmax.f32 %v773, 0.0
          %v798 = vmax.f32 %v778, 0.0
          %v799 = vmax.f32 %v781, 0.0
          %v800 = vpack.c.bf16 %v785, %v784
          %v801 = vpack.c.bf16 %v787, %v786
          %v802 = vpack.c.bf16 %v789, %v788
          %v803 = vpack.c.bf16 %v791, %v790
          %v804 = vpack.c.bf16 %v793, %v792
          %v805 = vpack.c.bf16 %v795, %v794
          %v806 = vpack.c.bf16 %v797, %v796
          %v807 = vpack.c.bf16 %v799, %v798
          %v808 = vld [vmem:[%s4] sm:$0xf]
          %v809 = vld [vmem:[%s4 + $0x4] sm:$0xf]
          %v810 = vld [vmem:[%s4 + $0x8] sm:$0xf]
          %v811 = vld [vmem:[%s4 + $0xc] sm:$0xf]
          %v812 = vld [vmem:[%s4 + $0x10] sm:$0xf]
          %v813 = vld [vmem:[%s4 + $0x14] sm:$0xf]
          %v814 = vld [vmem:[%s4 + $0x18] sm:$0xf]
          %v815 = vld [vmem:[%s4 + $0x1c] sm:$0xf]
          %v816 = vld [vmem:[%s4 + $0x20] sm:$0xf]
          %v817 = vld [vmem:[%s4 + $0x24] sm:$0xf]
          %v818 = vld [vmem:[%s4 + $0x28] sm:$0xf]
          %v819 = vld [vmem:[%s4 + $0x2c] sm:$0xf]
          %v820 = vld [vmem:[%s4 + $0x30] sm:$0xf]
          %v821 = vld [vmem:[%s4 + $0x34] sm:$0xf]
          %v822 = vld [vmem:[%s4 + $0x38] sm:$0xf]
          %v823 = vld [vmem:[%s4 + $0x3c] sm:$0xf]
          %v824 = vld [vmem:[%s5] sm:$0x1]
          %v826 = vlaneseq
          %v827 = vshrl.u32 %v826, 7
          %v828 = vsub.s32 0, %v827
          %v829 = vrot.slane %v824, %v828
          %v847 = vunpack.c.l.b16 %v808
          %v848 = vunpack.c.l.b16 %v809
          %v849 = vunpack.c.l.b16 %v810
          %v850 = vunpack.c.l.b16 %v811
          %v851 = vunpack.c.l.b16 %v812
          %v852 = vunpack.c.l.b16 %v813
          %v853 = vunpack.c.l.b16 %v814
          %v854 = vunpack.c.l.b16 %v815
          %v855 = vunpack.c.l.b16 %v816
          %v856 = vunpack.c.l.b16 %v817
          %v857 = vunpack.c.l.b16 %v818
          %v858 = vunpack.c.l.b16 %v819
          %v859 = vunpack.c.l.b16 %v820
          %v860 = vunpack.c.l.b16 %v821
          %v861 = vunpack.c.l.b16 %v822
          %v862 = vunpack.c.l.b16 %v823
          %v863 = vpack.c.b16 %v848, %v847
          %v864 = vpack.c.b16 %v850, %v849
          %v865 = vpack.c.b16 %v852, %v851
          %v866 = vpack.c.b16 %v854, %v853
          %v867 = vpack.c.b16 %v856, %v855
          %v868 = vpack.c.b16 %v858, %v857
          %v869 = vpack.c.b16 %v860, %v859
          %v870 = vpack.c.b16 %v862, %v861
          %879 = vmatprep.subr.bf16.mxu0 0
          %880 = vmatpush1.bf16.msra.mxu0 %v863
          %881 = vmatprep.subr.bf16.mxu0 0
          %882 = vmatpush1.bf16.msra.mxu0 %v864
          %883 = vmatprep.subr.bf16.mxu0 0
          %884 = vmatpush1.bf16.msra.mxu0 %v865
          %885 = vmatprep.subr.bf16.mxu0 0
          %886 = vmatpush1.bf16.msra.mxu0 %v866
          %887 = vmatprep.subr.bf16.mxu0 0
          %888 = vmatpush1.bf16.msra.mxu0 %v867
          %889 = vmatprep.subr.bf16.mxu0 0
          %890 = vmatpush1.bf16.msra.mxu0 %v868
          %891 = vmatprep.subr.bf16.mxu0 0
          %892 = vmatpush1.bf16.msra.mxu0 %v869
          %893 = vmatprep.subr.bf16.mxu0 0
          %894 = vmatpush1.bf16.msra.mxu0 %v870
          %895 = vmatprep.subr.bf16.mxu0 0
          %896 = vmatpush1.bf16.msra.mxu0 0
          %897 = vmatprep.subr.bf16.mxu0 0
          %898 = vmatpush1.bf16.msra.mxu0 0
          %899 = vmatprep.subr.bf16.mxu0 0
          %900 = vmatpush1.bf16.msra.mxu0 0
          %901 = vmatprep.subr.bf16.mxu0 0
          %902 = vmatpush1.bf16.msra.mxu0 0
          %903 = vmatprep.subr.bf16.mxu0 0
          %904 = vmatpush1.bf16.msra.mxu0 0
          %905 = vmatprep.subr.bf16.mxu0 0
          %906 = vmatpush1.bf16.msra.mxu0 0
          %907 = vmatprep.subr.bf16.mxu0 0
          %908 = vmatpush1.bf16.msra.mxu0 0
          %909 = vmatprep.subr.bf16.mxu0 0
          %910 = vmatpush1.bf16.msra.mxu0 0
          %911 = vmatprep.mubr.bf16.mxu0 0
          %912 = vmatmul.mubr.bf16.gmra.mrb[0].mxu0 %v800
          %v913 = vpop.f32.mrb[0].mxu0
          %v914 = vadd.f32 %v829, %v913
          %v915 = vpop.f32.mrb[0].mxu0
          %v916 = vpop.f32.mrb[0].mxu0
          %v917 = vadd.f32 %v829, %v916
          %v918 = vpop.f32.mrb[0].mxu0
          %919 = vmatprep.mubr.bf16.mxu0 0
          %920 = vmatmul.mubr.bf16.gmra.mrb[0].mxu0 %v801
          %v921 = vpop.f32.mrb[0].mxu0
          %v922 = vadd.f32 %v829, %v921
          %v923 = vpop.f32.mrb[0].mxu0
          %v924 = vpop.f32.mrb[0].mxu0
          %v925 = vadd.f32 %v829, %v924
          %v926 = vpop.f32.mrb[0].mxu0
          %927 = vmatprep.mubr.bf16.mxu0 0
          %928 = vmatmul.mubr.bf16.gmra.mrb[0].mxu0 %v802
          %v929 = vpop.f32.mrb[0].mxu0
          %v930 = vadd.f32 %v829, %v929
          %v931 = vpop.f32.mrb[0].mxu0
          %v932 = vpop.f32.mrb[0].mxu0
          %v933 = vadd.f32 %v829, %v932
          %v934 = vpop.f32.mrb[0].mxu0
          %935 = vmatprep.mubr.bf16.mxu0 0
          %936 = vmatmul.mubr.bf16.gmra.mrb[0].mxu0 %v803
          %v937 = vpop.f32.mrb[0].mxu0
          %v938 = vadd.f32 %v829, %v937
          %v939 = vpop.f32.mrb[0].mxu0
          %v940 = vpop.f32.mrb[0].mxu0
          %v941 = vadd.f32 %v829, %v940
          %v942 = vpop.f32.mrb[0].mxu0
          %943 = vmatprep.mubr.bf16.mxu0 0
          %944 = vmatmul.mubr.bf16.gmra.mrb[0].mxu0 %v804
          %v945 = vpop.f32.mrb[0].mxu0
          %v946 = vadd.f32 %v829, %v945
          %v947 = vpop.f32.mrb[0].mxu0
          %v948 = vpop.f32.mrb[0].mxu0
          %v949 = vadd.f32 %v829, %v948
          %v950 = vpop.f32.mrb[0].mxu0
          %951 = vmatprep.mubr.bf16.mxu0 0
          %952 = vmatmul.mubr.bf16.gmra.mrb[0].mxu0 %v805
          %v953 = vpop.f32.mrb[0].mxu0
          %v954 = vadd.f32 %v829, %v953
          %v955 = vpop.f32.mrb[0].mxu0
          %v956 = vpop.f32.mrb[0].mxu0
          %v957 = vadd.f32 %v829, %v956
          %v958 = vpop.f32.mrb[0].mxu0
          %959 = vmatprep.mubr.bf16.mxu0 0
          %960 = vmatmul.mubr.bf16.gmra.mrb[0].mxu0 %v806
          %v961 = vpop.f32.mrb[0].mxu0
          %v962 = vadd.f32 %v829, %v961
          %v963 = vpop.f32.mrb[0].mxu0
          %v964 = vpop.f32.mrb[0].mxu0
          %v965 = vadd.f32 %v829, %v964
          %v966 = vpop.f32.mrb[0].mxu0
          %967 = vmatprep.mubr.bf16.mxu0 0
          %968 = vmatmul.mubr.bf16.gmra.mrb[0].mxu0 %v807
          %v969 = vpop.f32.mrb[0].mxu0
          %v970 = vadd.f32 %v829, %v969
          %v971 = vpop.f32.mrb[0].mxu0
          %v972 = vpop.f32.mrb[0].mxu0
          %v973 = vadd.f32 %v829, %v972
          %v974 = vpop.f32.mrb[0].mxu0
          %975 = vdwg.mxu0
          %v976 = vmax.f32 %v914, 0.0
          %v977 = vmax.f32 %v917, 0.0
          %v978 = vmax.f32 %v922, 0.0
          %v979 = vmax.f32 %v925, 0.0
          %v980 = vmax.f32 %v930, 0.0
          %v981 = vmax.f32 %v933, 0.0
          %v982 = vmax.f32 %v938, 0.0
          %v983 = vmax.f32 %v941, 0.0
          %v984 = vmax.f32 %v946, 0.0
          %v985 = vmax.f32 %v949, 0.0
          %v986 = vmax.f32 %v954, 0.0
          %v987 = vmax.f32 %v957, 0.0
          %v988 = vmax.f32 %v962, 0.0
          %v989 = vmax.f32 %v965, 0.0
          %v990 = vmax.f32 %v970, 0.0
          %v991 = vmax.f32 %v973, 0.0
          %v992 = vpack.c.bf16 %v977, %v976
          %v993 = vpack.c.bf16 %v979, %v978
          %v994 = vpack.c.bf16 %v981, %v980
          %v995 = vpack.c.bf16 %v983, %v982
          %v996 = vpack.c.bf16 %v985, %v984
          %v997 = vpack.c.bf16 %v987, %v986
          %v998 = vpack.c.bf16 %v989, %v988
          %v999 = vpack.c.bf16 %v991, %v990
          %v1000 = vld [vmem:[%s6] sm:$0xf]
          %v1001 = vld [vmem:[%s6 + $0x4] sm:$0xf]
          %v1002 = vld [vmem:[%s6 + $0x8] sm:$0xf]
          %v1003 = vld [vmem:[%s6 + $0xc] sm:$0xf]
          %v1004 = vld [vmem:[%s6 + $0x10] sm:$0xf]
          %v1005 = vld [vmem:[%s6 + $0x14] sm:$0xf]
          %v1006 = vld [vmem:[%s6 + $0x18] sm:$0xf]
          %v1007 = vld [vmem:[%s6 + $0x1c] sm:$0xf]
          %v1008 = vld [vmem:[%s6 + $0x20] sm:$0xf]
          %v1009 = vld [vmem:[%s6 + $0x24] sm:$0xf]
          %v1010 = vld [vmem:[%s6 + $0x28] sm:$0xf]
          %v1011 = vld [vmem:[%s6 + $0x2c] sm:$0xf]
          %v1012 = vld [vmem:[%s6 + $0x30] sm:$0xf]
          %v1013 = vld [vmem:[%s6 + $0x34] sm:$0xf]
          %v1014 = vld [vmem:[%s6 + $0x38] sm:$0xf]
          %v1015 = vld [vmem:[%s6 + $0x3c] sm:$0xf]
          %v1016 = vld [vmem:[%s7] sm:$0x1]
          %v1018 = vlaneseq
          %v1019 = vshrl.u32 %v1018, 7
          %v1020 = vsub.s32 0, %v1019
          %v1021 = vrot.slane %v1016, %v1020
          %v1039 = vunpack.c.l.b16 %v1000
          %v1040 = vunpack.c.l.b16 %v1001
          %v1041 = vunpack.c.l.b16 %v1002
          %v1042 = vunpack.c.l.b16 %v1003
          %v1043 = vunpack.c.l.b16 %v1004
          %v1044 = vunpack.c.l.b16 %v1005
          %v1045 = vunpack.c.l.b16 %v1006
          %v1046 = vunpack.c.l.b16 %v1007
          %v1047 = vunpack.c.l.b16 %v1008
          %v1048 = vunpack.c.l.b16 %v1009
          %v1049 = vunpack.c.l.b16 %v1010
          %v1050 = vunpack.c.l.b16 %v1011
          %v1051 = vunpack.c.l.b16 %v1012
          %v1052 = vunpack.c.l.b16 %v1013
          %v1053 = vunpack.c.l.b16 %v1014
          %v1054 = vunpack.c.l.b16 %v1015
          %v1055 = vpack.c.b16 %v1040, %v1039
          %v1056 = vpack.c.b16 %v1042, %v1041
          %v1057 = vpack.c.b16 %v1044, %v1043
          %v1058 = vpack.c.b16 %v1046, %v1045
          %v1059 = vpack.c.b16 %v1048, %v1047
          %v1060 = vpack.c.b16 %v1050, %v1049
          %v1061 = vpack.c.b16 %v1052, %v1051
          %v1062 = vpack.c.b16 %v1054, %v1053
          %1071 = vmatprep.subr.bf16.mxu0 0
          %1072 = vmatpush1.bf16.msra.mxu0 %v1055
          %1073 = vmatprep.subr.bf16.mxu0 0
          %1074 = vmatpush1.bf16.msra.mxu0 %v1056
          %1075 = vmatprep.subr.bf16.mxu0 0
          %1076 = vmatpush1.bf16.msra.mxu0 %v1057
          %1077 = vmatprep.subr.bf16.mxu0 0
          %1078 = vmatpush1.bf16.msra.mxu0 %v1058
          %1079 = vmatprep.subr.bf16.mxu0 0
          %1080 = vmatpush1.bf16.msra.mxu0 %v1059
          %1081 = vmatprep.subr.bf16.mxu0 0
          %1082 = vmatpush1.bf16.msra.mxu0 %v1060
          %1083 = vmatprep.subr.bf16.mxu0 0
          %1084 = vmatpush1.bf16.msra.mxu0 %v1061
          %1085 = vmatprep.subr.bf16.mxu0 0
          %1086 = vmatpush1.bf16.msra.mxu0 %v1062
          %1087 = vmatprep.subr.bf16.mxu0 0
          %1088 = vmatpush1.bf16.msra.mxu0 0
          %1089 = vmatprep.subr.bf16.mxu0 0
          %1090 = vmatpush1.bf16.msra.mxu0 0
          %1091 = vmatprep.subr.bf16.mxu0 0
          %1092 = vmatpush1.bf16.msra.mxu0 0
          %1093 = vmatprep.subr.bf16.mxu0 0
          %1094 = vmatpush1.bf16.msra.mxu0 0
          %1095 = vmatprep.subr.bf16.mxu0 0
          %1096 = vmatpush1.bf16.msra.mxu0 0
          %1097 = vmatprep.subr.bf16.mxu0 0
          %1098 = vmatpush1.bf16.msra.mxu0 0
          %1099 = vmatprep.subr.bf16.mxu0 0
          %1100 = vmatpush1.bf16.msra.mxu0 0
          %1101 = vmatprep.subr.bf16.mxu0 0
          %1102 = vmatpush1.bf16.msra.mxu0 0
          %1103 = vmatprep.mubr.bf16.mxu0 0
          %1104 = vmatmul.mubr.bf16.gmra.mrb[0].mxu0 %v992
          %v1105 = vpop.f32.mrb[0].mxu0
          %v1106 = vadd.f32 %v1021, %v1105
          %v1107 = vpop.f32.mrb[0].mxu0
          %v1108 = vpop.f32.mrb[0].mxu0
          %v1109 = vadd.f32 %v1021, %v1108
          %v1110 = vpop.f32.mrb[0].mxu0
          %1111 = vmatprep.mubr.bf16.mxu0 0
          %1112 = vmatmul.mubr.bf16.gmra.mrb[0].mxu0 %v993
          %v1113 = vpop.f32.mrb[0].mxu0
          %v1114 = vadd.f32 %v1021, %v1113
          %v1115 = vpop.f32.mrb[0].mxu0
          %v1116 = vpop.f32.mrb[0].mxu0
          %v1117 = vadd.f32 %v1021, %v1116
          %v1118 = vpop.f32.mrb[0].mxu0
          %1119 = vmatprep.mubr.bf16.mxu0 0
          %1120 = vmatmul.mubr.bf16.gmra.mrb[0].mxu0 %v994
          %v1121 = vpop.f32.mrb[0].mxu0
          %v1122 = vadd.f32 %v1021, %v1121
          %v1123 = vpop.f32.mrb[0].mxu0
          %v1124 = vpop.f32.mrb[0].mxu0
          %v1125 = vadd.f32 %v1021, %v1124
          %v1126 = vpop.f32.mrb[0].mxu0
          %1127 = vmatprep.mubr.bf16.mxu0 0
          %1128 = vmatmul.mubr.bf16.gmra.mrb[0].mxu0 %v995
          %v1129 = vpop.f32.mrb[0].mxu0
          %v1130 = vadd.f32 %v1021, %v1129
          %v1131 = vpop.f32.mrb[0].mxu0
          %v1132 = vpop.f32.mrb[0].mxu0
          %v1133 = vadd.f32 %v1021, %v1132
          %v1134 = vpop.f32.mrb[0].mxu0
          %1135 = vmatprep.mubr.bf16.mxu0 0
          %1136 = vmatmul.mubr.bf16.gmra.mrb[0].mxu0 %v996
          %v1137 = vpop.f32.mrb[0].mxu0
          %v1138 = vadd.f32 %v1021, %v1137
          %v1139 = vpop.f32.mrb[0].mxu0
          %v1140 = vpop.f32.mrb[0].mxu0
          %v1141 = vadd.f32 %v1021, %v1140
          %v1142 = vpop.f32.mrb[0].mxu0
          %1143 = vmatprep.mubr.bf16.mxu0 0
          %1144 = vmatmul.mubr.bf16.gmra.mrb[0].mxu0 %v997
          %v1145 = vpop.f32.mrb[0].mxu0
          %v1146 = vadd.f32 %v1021, %v1145
          %v1147 = vpop.f32.mrb[0].mxu0
          %v1148 = vpop.f32.mrb[0].mxu0
          %v1149 = vadd.f32 %v1021, %v1148
          %v1150 = vpop.f32.mrb[0].mxu0
          %1151 = vmatprep.mubr.bf16.mxu0 0
          %1152 = vmatmul.mubr.bf16.gmra.mrb[0].mxu0 %v998
          %v1153 = vpop.f32.mrb[0].mxu0
          %v1154 = vadd.f32 %v1021, %v1153
          %v1155 = vpop.f32.mrb[0].mxu0
          %v1156 = vpop.f32.mrb[0].mxu0
          %v1157 = vadd.f32 %v1021, %v1156
          %v1158 = vpop.f32.mrb[0].mxu0
          %1159 = vmatprep.mubr.bf16.mxu0 0
          %1160 = vmatmul.mubr.bf16.gmra.mrb[0].mxu0 %v999
          %v1161 = vpop.f32.mrb[0].mxu0
          %v1162 = vadd.f32 %v1021, %v1161
          %v1163 = vpop.f32.mrb[0].mxu0
          %v1164 = vpop.f32.mrb[0].mxu0
          %v1165 = vadd.f32 %v1021, %v1164
          %v1166 = vpop.f32.mrb[0].mxu0
          %1167 = vdwg.mxu0
          %1168 = vmax.xlane.f32.xlu0 %v1106
          %v1169 = vpop.xlane.xlu0 %1168
          %1170 = vmax.xlane.f32.xlu0 %v1109
          %v1171 = vpop.xlane.xlu0 %1170
          %1172 = vmax.xlane.f32.xlu0 %v1114
          %v1173 = vpop.xlane.xlu0 %1172
          %1174 = vmax.xlane.f32.xlu0 %v1117
          %v1175 = vpop.xlane.xlu0 %1174
          %1176 = vmax.xlane.f32.xlu0 %v1122
          %v1177 = vpop.xlane.xlu0 %1176
          %1178 = vmax.xlane.f32.xlu0 %v1125
          %v1179 = vpop.xlane.xlu0 %1178
          %1180 = vmax.xlane.f32.xlu0 %v1130
          %v1181 = vpop.xlane.xlu0 %1180
          %1182 = vmax.xlane.f32.xlu0 %v1133
          %v1183 = vpop.xlane.xlu0 %1182
          %1184 = vmax.xlane.f32.xlu0 %v1138
          %v1185 = vpop.xlane.xlu0 %1184
          %1186 = vmax.xlane.f32.xlu0 %v1141
          %v1187 = vpop.xlane.xlu0 %1186
          %1188 = vmax.xlane.f32.xlu0 %v1146
          %v1189 = vpop.xlane.xlu0 %1188
          %1190 = vmax.xlane.f32.xlu0 %v1149
          %v1191 = vpop.xlane.xlu0 %1190
          %1192 = vmax.xlane.f32.xlu0 %v1154
          %v1193 = vpop.xlane.xlu0 %1192
          %1194 = vmax.xlane.f32.xlu0 %v1157
          %v1195 = vpop.xlane.xlu0 %1194
          %1196 = vmax.xlane.f32.xlu0 %v1162
          %v1197 = vpop.xlane.xlu0 %1196
          %1198 = vmax.xlane.f32.xlu0 %v1165
          %v1199 = vpop.xlane.xlu0 %1198
          %v1200 = vsub.f32 %v1106, %v1169
          %v1201 = vsub.f32 %v1109, %v1171
          %v1202 = vsub.f32 %v1114, %v1173
          %v1203 = vsub.f32 %v1117, %v1175
          %v1204 = vsub.f32 %v1122, %v1177
          %v1205 = vsub.f32 %v1125, %v1179
          %v1206 = vsub.f32 %v1130, %v1181
          %v1207 = vsub.f32 %v1133, %v1183
          %v1208 = vsub.f32 %v1138, %v1185
          %v1209 = vsub.f32 %v1141, %v1187
          %v1210 = vsub.f32 %v1146, %v1189
          %v1211 = vsub.f32 %v1149, %v1191
          %v1212 = vsub.f32 %v1154, %v1193
          %v1213 = vsub.f32 %v1157, %v1195
          %v1214 = vsub.f32 %v1162, %v1197
          %v1215 = vsub.f32 %v1165, %v1199
          %v1216 = vmul.f32 %v1200, 1.442695
          %v1217 = vpow.pop %v1216
          %v1218 = vmul.f32 %v1201, 1.442695
          %v1219 = vpow.pop %v1218
          %v1220 = vmul.f32 %v1202, 1.442695
          %v1221 = vpow.pop %v1220
          %v1222 = vmul.f32 %v1203, 1.442695
          %v1223 = vpow.pop %v1222
          %v1224 = vmul.f32 %v1204, 1.442695
          %v1225 = vpow.pop %v1224
          %v1226 = vmul.f32 %v1205, 1.442695
          %v1227 = vpow.pop %v1226
          %v1228 = vmul.f32 %v1206, 1.442695
          %v1229 = vpow.pop %v1228
          %v1230 = vmul.f32 %v1207, 1.442695
          %v1231 = vpow.pop %v1230
          %v1232 = vmul.f32 %v1208, 1.442695
          %v1233 = vpow.pop %v1232
          %v1234 = vmul.f32 %v1209, 1.442695
          %v1235 = vpow.pop %v1234
          %v1236 = vmul.f32 %v1210, 1.442695
          %v1237 = vpow.pop %v1236
          %v1238 = vmul.f32 %v1211, 1.442695
          %v1239 = vpow.pop %v1238
          %v1240 = vmul.f32 %v1212, 1.442695
          %v1241 = vpow.pop %v1240
          %v1242 = vmul.f32 %v1213, 1.442695
          %v1243 = vpow.pop %v1242
          %v1244 = vmul.f32 %v1214, 1.442695
          %v1245 = vpow.pop %v1244
          %v1246 = vmul.f32 %v1215, 1.442695
          %v1247 = vpow.pop %v1246
          %1248 = vadd.xlane.f32.xlu0 %v1217
          %v1249 = vpop.xlane.xlu0 %1248
          %1250 = vadd.xlane.f32.xlu0 %v1219
          %v1251 = vpop.xlane.xlu0 %1250
          %1252 = vadd.xlane.f32.xlu0 %v1221
          %v1253 = vpop.xlane.xlu0 %1252
          %1254 = vadd.xlane.f32.xlu0 %v1223
          %v1255 = vpop.xlane.xlu0 %1254
          %1256 = vadd.xlane.f32.xlu0 %v1225
          %v1257 = vpop.xlane.xlu0 %1256
          %1258 = vadd.xlane.f32.xlu0 %v1227
          %v1259 = vpop.xlane.xlu0 %1258
          %1260 = vadd.xlane.f32.xlu0 %v1229
          %v1261 = vpop.xlane.xlu0 %1260
          %1262 = vadd.xlane.f32.xlu0 %v1231
          %v1263 = vpop.xlane.xlu0 %1262
          %1264 = vadd.xlane.f32.xlu0 %v1233
          %v1265 = vpop.xlane.xlu0 %1264
          %1266 = vadd.xlane.f32.xlu0 %v1235
          %v1267 = vpop.xlane.xlu0 %1266
          %1268 = vadd.xlane.f32.xlu0 %v1237
          %v1269 = vpop.xlane.xlu0 %1268
          %1270 = vadd.xlane.f32.xlu0 %v1239
          %v1271 = vpop.xlane.xlu0 %1270
          %1272 = vadd.xlane.f32.xlu0 %v1241
          %v1273 = vpop.xlane.xlu0 %1272
          %1274 = vadd.xlane.f32.xlu0 %v1243
          %v1275 = vpop.xlane.xlu0 %1274
          %1276 = vadd.xlane.f32.xlu0 %v1245
          %v1277 = vpop.xlane.xlu0 %1276
          %1278 = vadd.xlane.f32.xlu0 %v1247
          %v1279 = vpop.xlane.xlu0 %1278
          %v1280 = vlog2.pop %v1249
          %v1281 = vmul.f32 %v1280, 0.6931472
          %v1282 = vlog2.pop %v1251
          %v1283 = vmul.f32 %v1282, 0.6931472
          %v1284 = vlog2.pop %v1253
          %v1285 = vmul.f32 %v1284, 0.6931472
          %v1286 = vlog2.pop %v1255
          %v1287 = vmul.f32 %v1286, 0.6931472
          %v1288 = vlog2.pop %v1257
          %v1289 = vmul.f32 %v1288, 0.6931472
          %v1290 = vlog2.pop %v1259
          %v1291 = vmul.f32 %v1290, 0.6931472
          %v1292 = vlog2.pop %v1261
          %v1293 = vmul.f32 %v1292, 0.6931472
          %v1294 = vlog2.pop %v1263
          %v1295 = vmul.f32 %v1294, 0.6931472
          %v1296 = vlog2.pop %v1265
          %v1297 = vmul.f32 %v1296, 0.6931472
          %v1298 = vlog2.pop %v1267
          %v1299 = vmul.f32 %v1298, 0.6931472
          %v1300 = vlog2.pop %v1269
          %v1301 = vmul.f32 %v1300, 0.6931472
          %v1302 = vlog2.pop %v1271
          %v1303 = vmul.f32 %v1302, 0.6931472
          %v1304 = vlog2.pop %v1273
          %v1305 = vmul.f32 %v1304, 0.6931472
          %v1306 = vlog2.pop %v1275
          %v1307 = vmul.f32 %v1306, 0.6931472
          %v1308 = vlog2.pop %v1277
          %v1309 = vmul.f32 %v1308, 0.6931472
          %v1310 = vlog2.pop %v1279
          %v1311 = vmul.f32 %v1310, 0.6931472
          %v1312 = vadd.f32 %v1281, %v1169
          %v1313 = vadd.f32 %v1283, %v1171
          %v1314 = vadd.f32 %v1285, %v1173
          %v1315 = vadd.f32 %v1287, %v1175
          %v1316 = vadd.f32 %v1289, %v1177
          %v1317 = vadd.f32 %v1291, %v1179
          %v1318 = vadd.f32 %v1293, %v1181
          %v1319 = vadd.f32 %v1295, %v1183
          %v1320 = vadd.f32 %v1297, %v1185
          %v1321 = vadd.f32 %v1299, %v1187
          %v1322 = vadd.f32 %v1301, %v1189
          %v1323 = vadd.f32 %v1303, %v1191
          %v1324 = vadd.f32 %v1305, %v1193
          %v1325 = vadd.f32 %v1307, %v1195
          %v1326 = vadd.f32 %v1309, %v1197
          %v1327 = vadd.f32 %v1311, %v1199
          %v1328 = vsub.f32 %v1106, %v1312
          %v1329 = vsub.f32 %v1109, %v1313
          %v1330 = vsub.f32 %v1114, %v1314
          %v1331 = vsub.f32 %v1117, %v1315
          %v1332 = vsub.f32 %v1122, %v1316
          %v1333 = vsub.f32 %v1125, %v1317
          %v1334 = vsub.f32 %v1130, %v1318
          %v1335 = vsub.f32 %v1133, %v1319
          %v1336 = vsub.f32 %v1138, %v1320
          %v1337 = vsub.f32 %v1141, %v1321
          %v1338 = vsub.f32 %v1146, %v1322
          %v1339 = vsub.f32 %v1149, %v1323
          %v1340 = vsub.f32 %v1154, %v1324
          %v1341 = vsub.f32 %v1157, %v1325
          %v1342 = vsub.f32 %v1162, %v1326
          %v1343 = vsub.f32 %v1165, %v1327
          %s1344 = scalar_lea.vmem %s299, %s314 [#allocation2]
          %1345 = vst [vmem:[%s1344] sm:$0xff] %v1328
          %1346 = vst [vmem:[%s1344 + $0x8] sm:$0xff] %v1329
          %1347 = vst [vmem:[%s1344 + $0x10] sm:$0xff] %v1330
          %1348 = vst [vmem:[%s1344 + $0x18] sm:$0xff] %v1331
          %1349 = vst [vmem:[%s1344 + $0x20] sm:$0xff] %v1332
          %1350 = vst [vmem:[%s1344 + $0x28] sm:$0xff] %v1333
          %1351 = vst [vmem:[%s1344 + $0x30] sm:$0xff] %v1334
          %1352 = vst [vmem:[%s1344 + $0x38] sm:$0xff] %v1335
          %1353 = vst [vmem:[%s1344 + $0x40] sm:$0xff] %v1336
          %1354 = vst [vmem:[%s1344 + $0x48] sm:$0xff] %v1337
          %1355 = vst [vmem:[%s1344 + $0x50] sm:$0xff] %v1338
          %1356 = vst [vmem:[%s1344 + $0x58] sm:$0xff] %v1339
          %1357 = vst [vmem:[%s1344 + $0x60] sm:$0xff] %v1340
          %1358 = vst [vmem:[%s1344 + $0x68] sm:$0xff] %v1341
          %1359 = vst [vmem:[%s1344 + $0x70] sm:$0xff] %v1342
          %1360 = vst [vmem:[%s1344 + $0x78] sm:$0xff] %v1343
        $region57: #{asr_nemo_forward.1} parent=51 // loop_footer
          %s313 = sadd.s32 1, %s309
        $region58: #{asr_nemo_forward.1} parent=51 // loop_footer_branch
          %308 = sbr.rel target = $region54
        $region59: #{asr_nemo_forward.1} parent=51 // loop_exit
          _
        %s1361 = sand.u32 %s203, 1
        %s1362 = scalar_lea.sflag [#allocation3], %s1361
        %s1363 = sand.u32 %s203, 1
        %s1364 = smul.addr %s1363, 512
        %s1365 = scalar_lea.vmem [#allocation2], %s1364
        // Predicated region
        $region60: #{asr_nemo_forward.1} parent=51 // pred_check
          %p1366 = pneg %p213
        $region61: #{asr_nemo_forward.1} parent=51 // pred_check_branch
          %1368 = sbr.rel (%p1366) target = $region63
        $region62: #{asr_nemo_forward.1} parent=51 // pred_region
          %s1369 = smul.u32 64, %s22
          %s1371 = ssub.s32 8192, 8192
          %1372 = vsyncadd %s1362, %s1371
          %s1373 = smul.addr %s1369, 128
          %s1374 = scalar_lea.hbm %s8, %s1373
          %s1375 = sshll.u32 %s1365, 4
          %s1376 = int_to_ptr.vmem [resolvable:$true] %s1375
          %1381 = dma.vmem_to_hbm [thread:$0]  %s1376, 8192, %s1374, %s1362, 128, 128, 8
        $region63: #{asr_nemo_forward.1} parent=51 // pred_fallthru
          _
      $region52: #{asr_nemo_forward.1} parent=5 // pred_fallthru
        _
      %p1382 = scmp.le.s32.totalorder 2, %s17
      // Predicated region
      $region64: #{asr_nemo_forward.1} parent=5 // pred_check
        %p1383 = pneg %p1382
      $region65: #{asr_nemo_forward.1} parent=5 // pred_check_branch
        %1385 = sbr.rel (%p1383) target = $region67
      $region66: #{asr_nemo_forward.1} parent=5 // pred_region
        %s1386 = ssub.s32 %s17, 2
        // Predicated region
        $region68: #{asr_nemo_forward.1} parent=66 // pred_check
          %p1387 = pneg %p219
        $region69: #{asr_nemo_forward.1} parent=66 // pred_check_branch
          %1389 = sbr.rel (%p1387) target = $region71
        $region70: #{asr_nemo_forward.1} parent=66 // pred_region
          %s1390 = sand.u32 %s204, 1
          %s1391 = scalar_lea.sflag [#allocation3], %s1390
          %s1392 = sand.u32 %s204, 1
          %s1393 = smul.addr %s1392, 512
          %s1394 = scalar_lea.vmem [#allocation2], %s1393
          %1395 = dma.done %s1391, 8192
        $region71: #{asr_nemo_forward.1} parent=66 // pred_fallthru
          _
      $region67: #{asr_nemo_forward.1} parent=5 // pred_fallthru
        _
    $region6: #{asr_nemo_forward.1} parent=1 // loop_footer
      %s21 = sadd.s32 1, %s17
    $region7: #{asr_nemo_forward.1} parent=1 // loop_footer_branch
      %16 = sbr.rel target = $region3
    $region8: #{asr_nemo_forward.1} parent=1 // loop_exit
      _
    %1396 = vsyncpa [#allocation3], 1
    %s1397 = scalar_lea.sflag [#allocation3], 1
    %1398 = vsyncpa %s1397, 1

</llo_original>
